<compile_context>
chip_gen: v6e
topology: v6e:2x2x1
jax: 0.10.0
libtpu: 0.0.40
codegen_flags: <defaults>
</compile_context>

<pallas_src>
import jax
import jax.numpy as jnp
from jax.experimental import pallas as pl
from jax.experimental.pallas import tpu as pltpu

HIDDEN = 256
HEAD_W = 128                       # lane-dense fused head width
PACK_W = 2 * HIDDEN + 3 * HEAD_W   # 896 lanes = 7 * 128 (b1|b2|bh|lo|hi)
LOG_STD_MIN = -20.0
LOG_STD_MAX = 2.0
_BIG = 1e30                        # "no clamp" sentinel for non-log_std lanes


def policy_kernel(x_ref, w1_ref, w2_ref, wh_ref, b_ref, out_ref):
    # One batch tile per grid step; weights/biases are VMEM-resident
    # (constant index_map -> DMA'd only on the first grid step).
    x = x_ref[...]

    # Packed biases / per-lane clamp bounds (static, 128-aligned lane slices).
    b1 = b_ref[:, 0:HIDDEN]
    b2 = b_ref[:, HIDDEN:2 * HIDDEN]
    bh = b_ref[:, 2 * HIDDEN:2 * HIDDEN + HEAD_W]
    lo = b_ref[:, 2 * HIDDEN + HEAD_W:2 * HIDDEN + 2 * HEAD_W]
    hi = b_ref[:, 2 * HIDDEN + 2 * HEAD_W:2 * HIDDEN + 3 * HEAD_W]

    # Layer 1: bf16 MXU matmul, f32 accumulation; bias/relu in f32 on VPU.
    h1 = jnp.dot(x.astype(jnp.bfloat16), w1_ref[...],
                 preferred_element_type=jnp.float32) + b1
    h1 = jnp.maximum(h1, 0.0)

    # Layer 2.
    h2 = jnp.dot(h1.astype(jnp.bfloat16), w2_ref[...],
                 preferred_element_type=jnp.float32) + b2
    h2 = jnp.maximum(h2, 0.0)

    # Fused heads: one matmul produces [mean | log_std | pad] across 128 lanes.
    heads = jnp.dot(h2.astype(jnp.bfloat16), wh_ref[...],
                    preferred_element_type=jnp.float32) + bh

    # Per-lane clamp: only the log_std lanes have finite lo/hi.
    out_ref[...] = jnp.minimum(jnp.maximum(heads, lo), hi)


def pack_params(params, action_dim):
    """Fuse/pad heads, pack biases + clamp bounds, cast weights to bf16."""
    (w1, b1, w2, b2, wm, bm, ws, bs) = params
    assert 2 * action_dim <= HEAD_W, "fused head assumes 2*action_dim <= 128"

    wh = jnp.zeros((HIDDEN, HEAD_W), jnp.float32)
    wh = wh.at[:, :action_dim].set(wm).at[:, action_dim:2 * action_dim].set(ws)

    bh = jnp.zeros((1, HEAD_W), jnp.float32)
    bh = bh.at[:, :action_dim].set(bm).at[:, action_dim:2 * action_dim].set(bs)

    lo = jnp.full((1, HEAD_W), -_BIG, jnp.float32)
    lo = lo.at[:, action_dim:2 * action_dim].set(LOG_STD_MIN)
    hi = jnp.full((1, HEAD_W), _BIG, jnp.float32)
    hi = hi.at[:, action_dim:2 * action_dim].set(LOG_STD_MAX)

    b_packed = jnp.concatenate([b1, b2, bh, lo, hi], axis=1)  # (1, 896) f32

    return (w1.astype(jnp.bfloat16),
            w2.astype(jnp.bfloat16),
            wh.astype(jnp.bfloat16),
            b_packed)


def _round_up(x, m):
    return -(-x // m) * m


def policy_net_forward(state, packed_params, action_dim, tb=256):
    """Batched forward. `tb` = batch row tile (>=256 keeps the MXU fed when
    compute-bound; shrinks to the padded batch when B is tiny)."""
    w1, w2, wh, b_packed = packed_params
    B, state_dim = state.shape

    # Pad batch to a multiple of 8 (unmasked sublane stores); tile rows by tb.
    b_pad = _round_up(B, 8)
    if b_pad <= tb:
        tb = b_pad
    else:
        b_pad = _round_up(b_pad, tb)
    if b_pad != B:
        state = jnp.pad(state, ((0, b_pad - B), (0, 0)))

    grid = (b_pad // tb,)

    flops = 2 * b_pad * (state_dim * HIDDEN + HIDDEN * HIDDEN + HIDDEN * HEAD_W)
    bytes_accessed = (b_pad * state_dim * 4 + w1.size * 2 + w2.size * 2
                      + wh.size * 2 + b_packed.size * 4 + b_pad * HEAD_W * 4)

    fused = pl.pallas_call(
        policy_kernel,
        out_shape=jax.ShapeDtypeStruct((b_pad, HEAD_W), jnp.float32),
        grid=grid,
        in_specs=[
            pl.BlockSpec((tb, state_dim), lambda i: (i, 0)),      # batch-tiled
            pl.BlockSpec((state_dim, HIDDEN), lambda i: (0, 0)),  # VMEM-resident
            pl.BlockSpec((HIDDEN, HIDDEN), lambda i: (0, 0)),     # VMEM-resident
            pl.BlockSpec((HIDDEN, HEAD_W), lambda i: (0, 0)),     # VMEM-resident
            pl.BlockSpec((1, PACK_W), lambda i: (0, 0)),          # VMEM-resident
        ],
        out_specs=pl.BlockSpec((tb, HEAD_W), lambda i: (i, 0)),
        cost_estimate=pl.CostEstimate(
            flops=flops, transcendentals=0, bytes_accessed=bytes_accessed),
        compiler_params=pltpu.CompilerParams(
            dimension_semantics=("parallel",),
            vmem_limit_bytes=4 * 1024 * 1024),
    )(state, w1, w2, wh, b_packed)

    mean = fused[:B, :action_dim]
    log_std = fused[:B, action_dim:2 * action_dim]
    return mean, log_std


def init_params(key, state_dim, action_dim, hidden=HIDDEN, edge=0.003):
    """Mirrors PyTorch PolicyNet.__init__ init distributions (weights stored as W.T)."""
    k1, k2, k3, k4, k5, k6, k7, k8 = jax.random.split(key, 8)

    bound1 = 1.0 / (state_dim ** 0.5)
    w1 = jax.random.uniform(k1, (state_dim, hidden), jnp.float32, -bound1, bound1)
    b1 = jax.random.uniform(k2, (1, hidden), jnp.float32, -bound1, bound1)

    bound2 = 1.0 / (hidden ** 0.5)
    w2 = jax.random.uniform(k3, (hidden, hidden), jnp.float32, -bound2, bound2)
    b2 = jax.random.uniform(k4, (1, hidden), jnp.float32, -bound2, bound2)

    wm = jax.random.uniform(k5, (hidden, action_dim), jnp.float32, -edge, edge)
    bm = jax.random.uniform(k6, (1, action_dim), jnp.float32, -edge, edge)

    ws = jax.random.uniform(k7, (hidden, action_dim), jnp.float32, -edge, edge)
    bs = jax.random.uniform(k8, (1, action_dim), jnp.float32, -edge, edge)

    return (w1, b1, w2, b2, wm, bm, ws, bs)


def policy_net_reference_f32(state, params):
    """Exact f32 module semantics (PyTorch forward)."""
    (w1, b1, w2, b2, wm, bm, ws, bs) = params
    x = jnp.maximum(state @ w1 + b1, 0.0)
    x = jnp.maximum(x @ w2 + b2, 0.0)
    mean = x @ wm + bm
    log_std = jnp.clip(x @ ws + bs, LOG_STD_MIN, LOG_STD_MAX)
    return mean, log_std


def policy_net_reference_bf16(state, params):
    """Pure-JAX reference mirroring the kernel's bf16-operand / f32-accumulate math."""
    (w1, b1, w2, b2, wm, bm, ws, bs) = params
    bf, f32 = jnp.bfloat16, jnp.float32
    h1 = jnp.maximum(jnp.dot(state.astype(bf), w1.astype(bf),
                             preferred_element_type=f32) + b1, 0.0)
    h2 = jnp.maximum(jnp.dot(h1.astype(bf), w2.astype(bf),
                             preferred_element_type=f32) + b2, 0.0)
    mean = jnp.dot(h2.astype(bf), wm.astype(bf), preferred_element_type=f32) + bm
    log_std = jnp.dot(h2.astype(bf), ws.astype(bf), preferred_element_type=f32) + bs
    return mean, jnp.clip(log_std, LOG_STD_MIN, LOG_STD_MAX)


def _check(state, params, packed, action_dim):
    mean, log_std = policy_net_forward(state, packed, action_dim)
    jax.block_until_ready((mean, log_std))

    B = state.shape[0]
    assert mean.shape == (B, action_dim) and log_std.shape == (B, action_dim)

    # Tight check against a reference using the same bf16-weight numerics.
    mean_bf, log_std_bf = policy_net_reference_bf16(state, params)
    assert jnp.allclose(mean, mean_bf, atol=1e-4, rtol=1e-4)
    assert jnp.allclose(log_std, log_std_bf, atol=1e-4, rtol=1e-4)

    # Loose check against exact f32 module semantics (bf16 weight quantization).
    mean_f32, log_std_f32 = policy_net_reference_f32(state, params)
    assert jnp.allclose(mean, mean_f32, atol=1e-2, rtol=1e-1)
    assert jnp.allclose(log_std, log_std_f32, atol=1e-2, rtol=1e-1)

    assert bool(jnp.all(log_std <= LOG_STD_MAX)) and bool(jnp.all(log_std >= LOG_STD_MIN))


if __name__ == "__main__":
    state_dim, action_dim = 16, 4

    key = jax.random.PRNGKey(0)
    k_params, k_state_small, k_state_big = jax.random.split(key, 3)

    params = init_params(k_params, state_dim, action_dim)
    packed = pack_params(params, action_dim)

    # Small acting-path batch (B=2 -> padded to 8, grid of 1).
    state_small = jax.random.normal(k_state_small, (2, state_dim), jnp.float32)
    _check(state_small, params, packed, action_dim)

    # Batched path (B=384 -> padded to 512, grid of 2, weights VMEM-resident
    # across tiles, batch axis "parallel" for v7x's two TensorCores).
    state_big = jax.random.normal(k_state_big, (384, state_dim), jnp.float32)
    _check(state_big, params, packed, action_dim)

    print("KERNEL_OK")
</pallas_src>

<mosaic_0001>
module attributes {stable_mosaic.version = 11 : i64} {
  func.func @policy_kernel(%arg0: i32, %arg1: memref<8x16xf32, #tpu.memory_space<vmem>>, %arg2: memref<16x256xbf16, #tpu.memory_space<vmem>>, %arg3: memref<256x256xbf16, #tpu.memory_space<vmem>>, %arg4: memref<256x128xbf16, #tpu.memory_space<vmem>>, %arg5: memref<1x896xf32, #tpu.memory_space<vmem>>, %arg6: memref<8x128xf32, #tpu.memory_space<vmem>>) attributes {dimension_semantics = [#tpu.dimension_semantics<parallel>], iteration_bounds = array<i64: 1>, scalar_prefetch = 0 : i64, scratch_operands = 0 : i64, tpu.core_type = #tpu.core_type<tc>, window_params = [{transform_indices = @transform_0, window_bounds = array<i64: 8, 16>}, {pipeline_mode = #tpu.pipeline_mode<synchronous>, transform_indices = @transform_1, window_bounds = array<i64: 16, 256>}, {pipeline_mode = #tpu.pipeline_mode<synchronous>, transform_indices = @transform_2, window_bounds = array<i64: 256, 256>}, {pipeline_mode = #tpu.pipeline_mode<synchronous>, transform_indices = @transform_3, window_bounds = array<i64: 256, 128>}, {pipeline_mode = #tpu.pipeline_mode<synchronous>, transform_indices = @transform_4, window_bounds = array<i64: 1, 896>}, {transform_indices = @transform_5, window_bounds = array<i64: 8, 128>}]} {
    %c0 = arith.constant 0 : index
    %c0_0 = arith.constant 0 : index
    %0 = vector.load %arg1[%c0, %c0_0] : memref<8x16xf32, #tpu.memory_space<vmem>>, vector<8x16xf32>
    %c0_1 = arith.constant 0 : index
    %c0_2 = arith.constant 0 : index
    %1 = vector.load %arg5[%c0_1, %c0_2] : memref<1x896xf32, #tpu.memory_space<vmem>>, vector<1x256xf32>
    %c0_3 = arith.constant 0 : index
    %c256 = arith.constant 256 : index
    %2 = vector.load %arg5[%c0_3, %c256] : memref<1x896xf32, #tpu.memory_space<vmem>>, vector<1x256xf32>
    %c0_4 = arith.constant 0 : index
    %c512 = arith.constant 512 : index
    %3 = vector.load %arg5[%c0_4, %c512] : memref<1x896xf32, #tpu.memory_space<vmem>>, vector<1x128xf32>
    %c0_5 = arith.constant 0 : index
    %c640 = arith.constant 640 : index
    %4 = vector.load %arg5[%c0_5, %c640] : memref<1x896xf32, #tpu.memory_space<vmem>>, vector<1x128xf32>
    %c0_6 = arith.constant 0 : index
    %c768 = arith.constant 768 : index
    %5 = vector.load %arg5[%c0_6, %c768] : memref<1x896xf32, #tpu.memory_space<vmem>>, vector<1x128xf32>
    %6 = arith.truncf %0 : vector<8x16xf32> to vector<8x16xbf16>
    %c0_7 = arith.constant 0 : index
    %c0_8 = arith.constant 0 : index
    %7 = vector.load %arg2[%c0_7, %c0_8] : memref<16x256xbf16, #tpu.memory_space<vmem>>, vector<16x256xbf16>
    %cst = arith.constant dense<0.000000e+00> : vector<8x256xf32>
    %8 = tpu.matmul %6, %7, %cst {dimension_numbers = #tpu.dot_dimension_numbers<[1], [0], [0], [1], [0, 0, 1, 1], [], []>} : vector<8x16xbf16>, vector<16x256xbf16>, vector<8x256xf32> -> vector<8x256xf32>
    %9 = vector.broadcast %1 : vector<1x256xf32> to vector<8x256xf32>
    %10 = arith.addf %8, %9 : vector<8x256xf32>
    %cst_9 = arith.constant 0.000000e+00 : f32
    %11 = vector.broadcast %cst_9 : f32 to vector<8x256xf32>
    %12 = arith.maximumf %10, %11 : vector<8x256xf32>
    %13 = arith.truncf %12 : vector<8x256xf32> to vector<8x256xbf16>
    %c0_10 = arith.constant 0 : index
    %c0_11 = arith.constant 0 : index
    %14 = vector.load %arg3[%c0_10, %c0_11] : memref<256x256xbf16, #tpu.memory_space<vmem>>, vector<256x256xbf16>
    %cst_12 = arith.constant dense<0.000000e+00> : vector<8x256xf32>
    %15 = tpu.matmul %13, %14, %cst_12 {dimension_numbers = #tpu.dot_dimension_numbers<[1], [0], [0], [1], [0, 0, 1, 1], [], []>} : vector<8x256xbf16>, vector<256x256xbf16>, vector<8x256xf32> -> vector<8x256xf32>
    %16 = vector.broadcast %2 : vector<1x256xf32> to vector<8x256xf32>
    %17 = arith.addf %15, %16 : vector<8x256xf32>
    %cst_13 = arith.constant 0.000000e+00 : f32
    %18 = vector.broadcast %cst_13 : f32 to vector<8x256xf32>
    %19 = arith.maximumf %17, %18 : vector<8x256xf32>
    %20 = arith.truncf %19 : vector<8x256xf32> to vector<8x256xbf16>
    %c0_14 = arith.constant 0 : index
    %c0_15 = arith.constant 0 : index
    %21 = vector.load %arg4[%c0_14, %c0_15] : memref<256x128xbf16, #tpu.memory_space<vmem>>, vector<256x128xbf16>
    %cst_16 = arith.constant dense<0.000000e+00> : vector<8x128xf32>
    %22 = tpu.matmul %20, %21, %cst_16 {dimension_numbers = #tpu.dot_dimension_numbers<[1], [0], [0], [1], [0, 0, 1, 1], [], []>} : vector<8x256xbf16>, vector<256x128xbf16>, vector<8x128xf32> -> vector<8x128xf32>
    %23 = vector.broadcast %3 : vector<1x128xf32> to vector<8x128xf32>
    %24 = arith.addf %22, %23 : vector<8x128xf32>
    %25 = vector.broadcast %4 : vector<1x128xf32> to vector<8x128xf32>
    %26 = arith.maximumf %24, %25 : vector<8x128xf32>
    %27 = vector.broadcast %5 : vector<1x128xf32> to vector<8x128xf32>
    %28 = arith.minimumf %26, %27 : vector<8x128xf32>
    %c0_17 = arith.constant 0 : index
    %c0_18 = arith.constant 0 : index
    %29 = vector.load %arg6[%c0_17, %c0_18] : memref<8x128xf32, #tpu.memory_space<vmem>>, vector<8x128xf32>
    tpu.vector_store %arg6[%c0_17, %c0_18], %28 {strides = array<i32>} : memref<8x128xf32, #tpu.memory_space<vmem>>, vector<8x128xf32>,
    return
  }
  func.func @transform_0(%arg0: i32) -> (i32, i32) {
    %c0_i32 = arith.constant 0 : i32
    %c0_i32_0 = arith.constant 0 : i32
    return %arg0, %c0_i32 : i32, i32
  }
  func.func @transform_1(%arg0: i32) -> (i32, i32) {
    %c0_i32 = arith.constant 0 : i32
    %c0_i32_0 = arith.constant 0 : i32
    %c0_i32_1 = arith.constant 0 : i32
    return %c0_i32, %c0_i32_0 : i32, i32
  }
  func.func @transform_2(%arg0: i32) -> (i32, i32) {
    %c0_i32 = arith.constant 0 : i32
    %c0_i32_0 = arith.constant 0 : i32
    %c0_i32_1 = arith.constant 0 : i32
    return %c0_i32, %c0_i32_0 : i32, i32
  }
  func.func @transform_3(%arg0: i32) -> (i32, i32) {
    %c0_i32 = arith.constant 0 : i32
    %c0_i32_0 = arith.constant 0 : i32
    %c0_i32_1 = arith.constant 0 : i32
    return %c0_i32, %c0_i32_0 : i32, i32
  }
  func.func @transform_4(%arg0: i32) -> (i32, i32) {
    %c0_i32 = arith.constant 0 : i32
    %c0_i32_0 = arith.constant 0 : i32
    %c0_i32_1 = arith.constant 0 : i32
    return %c0_i32, %c0_i32_0 : i32, i32
  }
  func.func @transform_5(%arg0: i32) -> (i32, i32) {
    %c0_i32 = arith.constant 0 : i32
    %c0_i32_0 = arith.constant 0 : i32
    return %arg0, %c0_i32 : i32, i32
  }
}

</mosaic_0001>

<llo_original>
// kernel: tpu_custom_call.1
$region0: #{tpu_custom_call.1}
  #allocation0 [shape = 'u32[]', space=smem, size = 0x4, offset = 0x4, fixed_abs, tag = 'smem constant byte address 0x4 - core index']
  #allocation1 [shape = 'u32[144,128]{1,0:T(1,128)}', space=vmem, size = 0x12000, scoped, tag = 'internal scratch']
  %s0 = inlined_call_operand.hbm [shape: f32[8,16], index: 0, kind: input, shape index: {}]
  %s1 = inlined_call_operand.hbm [shape: bf16[16,256], index: 1, kind: input, shape index: {}]
  %s2 = inlined_call_operand.hbm [shape: bf16[256,256], index: 2, kind: input, shape index: {}]
  %s3 = inlined_call_operand.hbm [shape: bf16[256,128], index: 3, kind: input, shape index: {}]
  %s4 = inlined_call_operand.vmem [shape: f32[1,896], index: 4, kind: input, shape index: {}]
  %s5 = inlined_call_operand.hbm [shape: f32[8,128], index: 5, kind: output, shape index: {}]
  %s6 = sld [smem:[#allocation0]]
  $region46: #{tpu_custom_call.1} parent=0
    _
  %s8 = ssub.s32 1, %s6
  %s9 = scalar_select 0, %s8, %s6
  $region1: #{tpu_custom_call.1} parent=0
    #allocation2 [shape = 'u8[4096]{0}', space=vmem, size = 0x1000, scoped, tag = 'input window, operand 0, single buffered']
    #allocation3 [shape = 's32[1]{0}', space=sflag, size = 0x4, scoped, tag = 'scoped memory for tpu_custom_call.1']
    #allocation4 [shape = 's32[1]{0}', space=sflag, size = 0x4, scoped, tag = 'scoped memory for tpu_custom_call.1']
    #allocation5 [shape = 'u8[8192]{0}', space=vmem, size = 0x2000, scoped, tag = 'input window, operand 1, single buffered']
    #allocation6 [shape = 's32[1]{0}', space=sflag, size = 0x4, scoped, tag = 'scoped memory for tpu_custom_call.1']
    #allocation7 [shape = 'u8[131072]{0}', space=vmem, size = 0x20000, scoped, tag = 'input window, operand 2, single buffered']
    #allocation8 [shape = 'u8[65536]{0}', space=vmem, size = 0x10000, scoped, tag = 'input window, operand 3, single buffered']
    #allocation9 [shape = 's32[1]{0}', space=sflag, size = 0x4, scoped, tag = 'scoped memory for tpu_custom_call.1']
    #allocation10 [shape = 'u8[4096]{0}', space=vmem, size = 0x1000, scoped, tag = 'output window, operand 0, single buffered']
    %10 = vsyncpa [#allocation3], 0
    %11 = vsyncpa [#allocation6], 0
    %12 = vsyncpa [#allocation9], 0
    %13 = vsyncpa [#allocation4], 0
    // Predicated region
    $region2: #{tpu_custom_call.1} parent=1 // pred_check
      _
    $region3: #{tpu_custom_call.1} parent=1 // pred_check_branch
      %15 = sbr.rel (0) target = $region5
    $region4: #{tpu_custom_call.1} parent=1 // pred_region
      %s17 = ssub.s32 128, 128
      %18 = vsyncadd [#allocation3], %s17
      %s20 = sshll.u32 [#allocation2], 4
      %s21 = int_to_ptr.vmem [resolvable:$true] %s20
      %23 = dma.hbm_to_vmem [thread:$0]  %s0, 128, %s21, [#allocation3]
    $region5: #{tpu_custom_call.1} parent=1 // pred_fallthru
      _
    // Predicated region
    $region6: #{tpu_custom_call.1} parent=1 // pred_check
      _
    $region7: #{tpu_custom_call.1} parent=1 // pred_check_branch
      %25 = sbr.rel (0) target = $region9
    $region8: #{tpu_custom_call.1} parent=1 // pred_region
      %s27 = ssub.s32 256, 256
      %28 = vsyncadd [#allocation6], %s27
      %s29 = sshll.u32 [#allocation5], 4
      %s30 = int_to_ptr.vmem [resolvable:$true] %s29
      %35 = dma.hbm_to_vmem [thread:$0]  %s1, 256, %s30, [#allocation6], 128, 128, 8
    $region9: #{tpu_custom_call.1} parent=1 // pred_fallthru
      _
    // Predicated region
    $region10: #{tpu_custom_call.1} parent=1 // pred_check
      _
    $region11: #{tpu_custom_call.1} parent=1 // pred_check_branch
      %37 = sbr.rel (0) target = $region13
    $region12: #{tpu_custom_call.1} parent=1 // pred_region
      %s39 = ssub.s32 4096, 4096
      %40 = vsyncadd [#allocation6], %s39
      %s41 = sshll.u32 [#allocation7], 4
      %s42 = int_to_ptr.vmem [resolvable:$true] %s41
      %47 = dma.hbm_to_vmem [thread:$0]  %s2, 4096, %s42, [#allocation6], 128, 128, 8
    $region13: #{tpu_custom_call.1} parent=1 // pred_fallthru
      _
    // Predicated region
    $region14: #{tpu_custom_call.1} parent=1 // pred_check
      _
    $region15: #{tpu_custom_call.1} parent=1 // pred_check_branch
      %49 = sbr.rel (0) target = $region17
    $region16: #{tpu_custom_call.1} parent=1 // pred_region
      %s51 = ssub.s32 2048, 2048
      %52 = vsyncadd [#allocation9], %s51
      %s53 = sshll.u32 [#allocation8], 4
      %s54 = int_to_ptr.vmem [resolvable:$true] %s53
      %59 = dma.hbm_to_vmem [thread:$0]  %s3, 2048, %s54, [#allocation9], 64, 64, 4
    $region17: #{tpu_custom_call.1} parent=1 // pred_fallthru
      _
    // Predicated region
    $region18: #{tpu_custom_call.1} parent=1 // pred_check
      _
    $region19: #{tpu_custom_call.1} parent=1 // pred_check_branch
      %61 = sbr.rel (0) target = $region21
    $region20: #{tpu_custom_call.1} parent=1 // pred_region
      _
    $region21: #{tpu_custom_call.1} parent=1 // pred_fallthru
      _
    // Predicated region
    $region22: #{tpu_custom_call.1} parent=1 // pred_check
      _
    $region23: #{tpu_custom_call.1} parent=1 // pred_check_branch
      %63 = sbr.rel (0) target = $region25
    $region24: #{tpu_custom_call.1} parent=1 // pred_region
      %64 = dma.done [#allocation3], 128
    $region25: #{tpu_custom_call.1} parent=1 // pred_fallthru
      _
    // Predicated region
    $region26: #{tpu_custom_call.1} parent=1 // pred_check
      _
    $region27: #{tpu_custom_call.1} parent=1 // pred_check_branch
      %66 = sbr.rel (0) target = $region29
    $region28: #{tpu_custom_call.1} parent=1 // pred_region
      %67 = dma.done [#allocation6], 256
    $region29: #{tpu_custom_call.1} parent=1 // pred_fallthru
      _
    // Predicated region
    $region30: #{tpu_custom_call.1} parent=1 // pred_check
      _
    $region31: #{tpu_custom_call.1} parent=1 // pred_check_branch
      %69 = sbr.rel (0) target = $region33
    $region32: #{tpu_custom_call.1} parent=1 // pred_region
      %70 = dma.done [#allocation6], 4096
    $region33: #{tpu_custom_call.1} parent=1 // pred_fallthru
      _
    // Predicated region
    $region34: #{tpu_custom_call.1} parent=1 // pred_check
      _
    $region35: #{tpu_custom_call.1} parent=1 // pred_check_branch
      %72 = sbr.rel (0) target = $region37
    $region36: #{tpu_custom_call.1} parent=1 // pred_region
      %73 = dma.done [#allocation9], 2048
    $region37: #{tpu_custom_call.1} parent=1 // pred_fallthru
      _
    %v75 = vld [vmem:[#allocation2] sm:$0xff]
    %v76 = vld [vmem:[%s4] sm:$0x3]
    %v77 = vld [vmem:[%s4 + $0x2] sm:$0x3]
    %v78 = vld [vmem:[%s4 + $0x4] sm:$0x1]
    %v79 = vld [vmem:[%s4 + $0x5] sm:$0x1]
    %v80 = vld [vmem:[%s4 + $0x6] sm:$0x1]
    %v81 = vpack.c.bf16 %v75, %v75
    %v82 = vld [vmem:[#allocation5] sm:$0xff]
    %v83 = vld [vmem:[#allocation5 + $0x8] sm:$0xff]
    %v85 = vlaneseq
    %v86 = vshrl.u32 %v85, 7
    %v87 = vsub.s32 0, %v86
    %v88 = vrot.slane %v76, %v87
    %v89 = vlaneseq
    %v90 = vshrl.u32 %v89, 7
    %v91 = vsub.s32 1, %v90
    %v92 = vrot.slane %v76, %v91
    %v97 = vunpack.c.l.b16 %v82
    %v98 = vunpack.c.h.b16 %v82
    %v99 = vunpack.c.l.b16 %v83
    %v100 = vunpack.c.h.b16 %v83
    %v101 = vpack.c.b16 %v99, %v97
    %v102 = vpack.c.b16 %v100, %v98
    %vm105 = vcmask 130048
    %v107 = vsel %vm105, %v81, 0
    %109 = vmatprep.subr.bf16.mxu0 0
    %110 = vmatpush1.bf16.msra.mxu0 0
    %111 = vmatprep.subr.bf16.mxu0 0
    %112 = vmatpush1.bf16.msra.mxu0 0
    %113 = vmatprep.subr.bf16.mxu0 0
    %114 = vmatpush1.bf16.msra.mxu0 0
    %115 = vmatprep.subr.bf16.mxu0 0
    %116 = vmatpush1.bf16.msra.mxu0 0
    %117 = vmatprep.subr.bf16.mxu0 0
    %118 = vmatpush1.bf16.msra.mxu0 0
    %119 = vmatprep.subr.bf16.mxu0 0
    %120 = vmatpush1.bf16.msra.mxu0 0
    %121 = vmatprep.subr.bf16.mxu0 0
    %122 = vmatpush1.bf16.msra.mxu0 0
    %123 = vmatprep.subr.bf16.mxu0 %v102
    %124 = vmatpush1.bf16.msra.mxu0 %v101
    %125 = vmatprep.subr.bf16.mxu0 0
    %126 = vmatpush2.bf16.msra.mxu0 0
    %127 = vmatprep.subr.bf16.mxu0 0
    %128 = vmatpush2.bf16.msra.mxu0 0
    %129 = vmatprep.subr.bf16.mxu0 0
    %130 = vmatpush2.bf16.msra.mxu0 0
    %131 = vmatprep.subr.bf16.mxu0 0
    %132 = vmatpush2.bf16.msra.mxu0 0
    %133 = vmatprep.subr.bf16.mxu0 0
    %134 = vmatpush2.bf16.msra.mxu0 0
    %135 = vmatprep.subr.bf16.mxu0 0
    %136 = vmatpush2.bf16.msra.mxu0 0
    %137 = vmatprep.subr.bf16.mxu0 0
    %138 = vmatpush2.bf16.msra.mxu0 0
    %139 = vmatprep.subr.bf16.mxu0 0
    %140 = vmatpush2.bf16.msra.mxu0 0
    %141 = vmatprep.mubr.bf16.mxu0 0
    %142 = vmatmul.mubr.bf16.gmra.mxu0 %v107
    %v143 = vpop.f32.mrf.mxu0
    %v144 = vadd.f32 %v88, %v143
    %v145 = vpop.f32.mrf.mxu0
    %v146 = vadd.f32 %v92, %v145
    %v147 = vpop.f32.mrf.mxu0
    %v148 = vpop.f32.mrf.mxu0
    %149 = vdwg.mxu0
    %v150 = vmax.f32 %v144, 0.0
    %v151 = vmax.f32 %v146, 0.0
    %v152 = vpack.c.bf16 %v150, %v150
    %v153 = vpack.c.bf16 %v151, %v151
    %v154 = vld [vmem:[#allocation7] sm:$0xff]
    %v155 = vld [vmem:[#allocation7 + $0x8] sm:$0xff]
    %v156 = vld [vmem:[#allocation7 + $0x10] sm:$0xff]
    %v157 = vld [vmem:[#allocation7 + $0x18] sm:$0xff]
    %v158 = vld [vmem:[#allocation7 + $0x20] sm:$0xff]
    %v159 = vld [vmem:[#allocation7 + $0x28] sm:$0xff]
    %v160 = vld [vmem:[#allocation7 + $0x30] sm:$0xff]
    %v161 = vld [vmem:[#allocation7 + $0x38] sm:$0xff]
    %v162 = vld [vmem:[#allocation7 + $0x40] sm:$0xff]
    %v163 = vld [vmem:[#allocation7 + $0x48] sm:$0xff]
    %v164 = vld [vmem:[#allocation7 + $0x50] sm:$0xff]
    %v165 = vld [vmem:[#allocation7 + $0x58] sm:$0xff]
    %v166 = vld [vmem:[#allocation7 + $0x60] sm:$0xff]
    %v167 = vld [vmem:[#allocation7 + $0x68] sm:$0xff]
    %v168 = vld [vmem:[#allocation7 + $0x70] sm:$0xff]
    %v169 = vld [vmem:[#allocation7 + $0x78] sm:$0xff]
    %v170 = vld [vmem:[#allocation7 + $0x80] sm:$0xff]
    %v171 = vld [vmem:[#allocation7 + $0x88] sm:$0xff]
    %v172 = vld [vmem:[#allocation7 + $0x90] sm:$0xff]
    %v173 = vld [vmem:[#allocation7 + $0x98] sm:$0xff]
    %v174 = vld [vmem:[#allocation7 + $0xa0] sm:$0xff]
    %v175 = vld [vmem:[#allocation7 + $0xa8] sm:$0xff]
    %v176 = vld [vmem:[#allocation7 + $0xb0] sm:$0xff]
    %v177 = vld [vmem:[#allocation7 + $0xb8] sm:$0xff]
    %v178 = vld [vmem:[#allocation7 + $0xc0] sm:$0xff]
    %v179 = vld [vmem:[#allocation7 + $0xc8] sm:$0xff]
    %v180 = vld [vmem:[#allocation7 + $0xd0] sm:$0xff]
    %v181 = vld [vmem:[#allocation7 + $0xd8] sm:$0xff]
    %v182 = vld [vmem:[#allocation7 + $0xe0] sm:$0xff]
    %v183 = vld [vmem:[#allocation7 + $0xe8] sm:$0xff]
    %v184 = vld [vmem:[#allocation7 + $0xf0] sm:$0xff]
    %v185 = vld [vmem:[#allocation7 + $0xf8] sm:$0xff]
    %v187 = vlaneseq
    %v188 = vshrl.u32 %v187, 7
    %v189 = vsub.s32 0, %v188
    %v190 = vrot.slane %v77, %v189
    %v191 = vlaneseq
    %v192 = vshrl.u32 %v191, 7
    %v193 = vsub.s32 1, %v192
    %v194 = vrot.slane %v77, %v193
    %v229 = vunpack.c.l.b16 %v154
    %v230 = vunpack.c.h.b16 %v154
    %v231 = vunpack.c.l.b16 %v155
    %v232 = vunpack.c.h.b16 %v155
    %v233 = vunpack.c.l.b16 %v156
    %v234 = vunpack.c.h.b16 %v156
    %v235 = vunpack.c.l.b16 %v157
    %v236 = vunpack.c.h.b16 %v157
    %v237 = vunpack.c.l.b16 %v158
    %v238 = vunpack.c.h.b16 %v158
    %v239 = vunpack.c.l.b16 %v159
    %v240 = vunpack.c.h.b16 %v159
    %v241 = vunpack.c.l.b16 %v160
    %v242 = vunpack.c.h.b16 %v160
    %v243 = vunpack.c.l.b16 %v161
    %v244 = vunpack.c.h.b16 %v161
    %v245 = vunpack.c.l.b16 %v162
    %v246 = vunpack.c.h.b16 %v162
    %v247 = vunpack.c.l.b16 %v163
    %v248 = vunpack.c.h.b16 %v163
    %v249 = vunpack.c.l.b16 %v164
    %v250 = vunpack.c.h.b16 %v164
    %v251 = vunpack.c.l.b16 %v165
    %v252 = vunpack.c.h.b16 %v165
    %v253 = vunpack.c.l.b16 %v166
    %v254 = vunpack.c.h.b16 %v166
    %v255 = vunpack.c.l.b16 %v167
    %v256 = vunpack.c.h.b16 %v167
    %v257 = vunpack.c.l.b16 %v168
    %v258 = vunpack.c.h.b16 %v168
    %v259 = vunpack.c.l.b16 %v169
    %v260 = vunpack.c.h.b16 %v169
    %v261 = vunpack.c.l.b16 %v170
    %v262 = vunpack.c.h.b16 %v170
    %v263 = vunpack.c.l.b16 %v171
    %v264 = vunpack.c.h.b16 %v171
    %v265 = vunpack.c.l.b16 %v172
    %v266 = vunpack.c.h.b16 %v172
    %v267 = vunpack.c.l.b16 %v173
    %v268 = vunpack.c.h.b16 %v173
    %v269 = vunpack.c.l.b16 %v174
    %v270 = vunpack.c.h.b16 %v174
    %v271 = vunpack.c.l.b16 %v175
    %v272 = vunpack.c.h.b16 %v175
    %v273 = vunpack.c.l.b16 %v176
    %v274 = vunpack.c.h.b16 %v176
    %v275 = vunpack.c.l.b16 %v177
    %v276 = vunpack.c.h.b16 %v177
    %v277 = vunpack.c.l.b16 %v178
    %v278 = vunpack.c.h.b16 %v178
    %v279 = vunpack.c.l.b16 %v179
    %v280 = vunpack.c.h.b16 %v179
    %v281 = vunpack.c.l.b16 %v180
    %v282 = vunpack.c.h.b16 %v180
    %v283 = vunpack.c.l.b16 %v181
    %v284 = vunpack.c.h.b16 %v181
    %v285 = vunpack.c.l.b16 %v182
    %v286 = vunpack.c.h.b16 %v182
    %v287 = vunpack.c.l.b16 %v183
    %v288 = vunpack.c.h.b16 %v183
    %v289 = vunpack.c.l.b16 %v184
    %v290 = vunpack.c.h.b16 %v184
    %v291 = vunpack.c.l.b16 %v185
    %v292 = vunpack.c.h.b16 %v185
    %v293 = vpack.c.b16 %v231, %v229
    %v294 = vpack.c.b16 %v232, %v230
    %v295 = vpack.c.b16 %v235, %v233
    %v296 = vpack.c.b16 %v236, %v234
    %v297 = vpack.c.b16 %v239, %v237
    %v298 = vpack.c.b16 %v240, %v238
    %v299 = vpack.c.b16 %v243, %v241
    %v300 = vpack.c.b16 %v244, %v242
    %v301 = vpack.c.b16 %v247, %v245
    %v302 = vpack.c.b16 %v248, %v246
    %v303 = vpack.c.b16 %v251, %v249
    %v304 = vpack.c.b16 %v252, %v250
    %v305 = vpack.c.b16 %v255, %v253
    %v306 = vpack.c.b16 %v256, %v254
    %v307 = vpack.c.b16 %v259, %v257
    %v308 = vpack.c.b16 %v260, %v258
    %v309 = vpack.c.b16 %v263, %v261
    %v310 = vpack.c.b16 %v264, %v262
    %v311 = vpack.c.b16 %v267, %v265
    %v312 = vpack.c.b16 %v268, %v266
    %v313 = vpack.c.b16 %v271, %v269
    %v314 = vpack.c.b16 %v272, %v270
    %v315 = vpack.c.b16 %v275, %v273
    %v316 = vpack.c.b16 %v276, %v274
    %v317 = vpack.c.b16 %v279, %v277
    %v318 = vpack.c.b16 %v280, %v278
    %v319 = vpack.c.b16 %v283, %v281
    %v320 = vpack.c.b16 %v284, %v282
    %v321 = vpack.c.b16 %v287, %v285
    %v322 = vpack.c.b16 %v288, %v286
    %v323 = vpack.c.b16 %v291, %v289
    %v324 = vpack.c.b16 %v292, %v290
    %357 = vmatprep.subr.bf16.mxu0 %v308
    %358 = vmatpush1.bf16.msra.mxu0 %v307
    %359 = vmatprep.subr.bf16.mxu0 %v306
    %360 = vmatpush1.bf16.msra.mxu0 %v305
    %361 = vmatprep.subr.bf16.mxu0 %v304
    %362 = vmatpush1.bf16.msra.mxu0 %v303
    %363 = vmatprep.subr.bf16.mxu0 %v302
    %364 = vmatpush1.bf16.msra.mxu0 %v301
    %365 = vmatprep.subr.bf16.mxu0 %v300
    %366 = vmatpush1.bf16.msra.mxu0 %v299
    %367 = vmatprep.subr.bf16.mxu0 %v298
    %368 = vmatpush1.bf16.msra.mxu0 %v297
    %369 = vmatprep.subr.bf16.mxu0 %v296
    %370 = vmatpush1.bf16.msra.mxu0 %v295
    %371 = vmatprep.subr.bf16.mxu0 %v294
    %372 = vmatpush1.bf16.msra.mxu0 %v293
    %373 = vmatprep.subr.bf16.mxu0 %v324
    %374 = vmatpush2.bf16.msra.mxu0 %v323
    %375 = vmatprep.subr.bf16.mxu0 %v322
    %376 = vmatpush2.bf16.msra.mxu0 %v321
    %377 = vmatprep.subr.bf16.mxu0 %v320
    %378 = vmatpush2.bf16.msra.mxu0 %v319
    %379 = vmatprep.subr.bf16.mxu0 %v318
    %380 = vmatpush2.bf16.msra.mxu0 %v317
    %381 = vmatprep.subr.bf16.mxu0 %v316
    %382 = vmatpush2.bf16.msra.mxu0 %v315
    %383 = vmatprep.subr.bf16.mxu0 %v314
    %384 = vmatpush2.bf16.msra.mxu0 %v313
    %385 = vmatprep.subr.bf16.mxu0 %v312
    %386 = vmatpush2.bf16.msra.mxu0 %v311
    %387 = vmatprep.subr.bf16.mxu0 %v310
    %388 = vmatpush2.bf16.msra.mxu0 %v309
    %389 = vmatprep.mubr.bf16.mxu0 %v153
    %390 = vmatmul.mubr.bf16.gmra.mxu0 %v152
    %v391 = vpop.f32.mrf.mxu0
    %v392 = vadd.f32 %v190, %v391
    %v393 = vpop.f32.mrf.mxu0
    %v394 = vadd.f32 %v194, %v393
    %v395 = vpop.f32.mrf.mxu0
    %v396 = vpop.f32.mrf.mxu0
    %397 = vdwg.mxu0
    %v398 = vmax.f32 %v392, 0.0
    %v399 = vmax.f32 %v394, 0.0
    %v400 = vpack.c.bf16 %v398, %v398
    %v401 = vpack.c.bf16 %v399, %v399
    %v402 = vld [vmem:[#allocation8] sm:$0xf]
    %v403 = vld [vmem:[#allocation8 + $0x4] sm:$0xf]
    %v404 = vld [vmem:[#allocation8 + $0x8] sm:$0xf]
    %v405 = vld [vmem:[#allocation8 + $0xc] sm:$0xf]
    %v406 = vld [vmem:[#allocation8 + $0x10] sm:$0xf]
    %v407 = vld [vmem:[#allocation8 + $0x14] sm:$0xf]
    %v408 = vld [vmem:[#allocation8 + $0x18] sm:$0xf]
    %v409 = vld [vmem:[#allocation8 + $0x1c] sm:$0xf]
    %v410 = vld [vmem:[#allocation8 + $0x20] sm:$0xf]
    %v411 = vld [vmem:[#allocation8 + $0x24] sm:$0xf]
    %v412 = vld [vmem:[#allocation8 + $0x28] sm:$0xf]
    %v413 = vld [vmem:[#allocation8 + $0x2c] sm:$0xf]
    %v414 = vld [vmem:[#allocation8 + $0x30] sm:$0xf]
    %v415 = vld [vmem:[#allocation8 + $0x34] sm:$0xf]
    %v416 = vld [vmem:[#allocation8 + $0x38] sm:$0xf]
    %v417 = vld [vmem:[#allocation8 + $0x3c] sm:$0xf]
    %v418 = vld [vmem:[#allocation8 + $0x40] sm:$0xf]
    %v419 = vld [vmem:[#allocation8 + $0x44] sm:$0xf]
    %v420 = vld [vmem:[#allocation8 + $0x48] sm:$0xf]
    %v421 = vld [vmem:[#allocation8 + $0x4c] sm:$0xf]
    %v422 = vld [vmem:[#allocation8 + $0x50] sm:$0xf]
    %v423 = vld [vmem:[#allocation8 + $0x54] sm:$0xf]
    %v424 = vld [vmem:[#allocation8 + $0x58] sm:$0xf]
    %v425 = vld [vmem:[#allocation8 + $0x5c] sm:$0xf]
    %v426 = vld [vmem:[#allocation8 + $0x60] sm:$0xf]
    %v427 = vld [vmem:[#allocation8 + $0x64] sm:$0xf]
    %v428 = vld [vmem:[#allocation8 + $0x68] sm:$0xf]
    %v429 = vld [vmem:[#allocation8 + $0x6c] sm:$0xf]
    %v430 = vld [vmem:[#allocation8 + $0x70] sm:$0xf]
    %v431 = vld [vmem:[#allocation8 + $0x74] sm:$0xf]
    %v432 = vld [vmem:[#allocation8 + $0x78] sm:$0xf]
    %v433 = vld [vmem:[#allocation8 + $0x7c] sm:$0xf]
    %v435 = vlaneseq
    %v436 = vshrl.u32 %v435, 7
    %v437 = vsub.s32 0, %v436
    %v438 = vrot.slane %v78, %v437
    %v472 = vunpack.c.l.b16 %v402
    %v473 = vunpack.c.l.b16 %v403
    %v474 = vunpack.c.l.b16 %v404
    %v475 = vunpack.c.l.b16 %v405
    %v476 = vunpack.c.l.b16 %v406
    %v477 = vunpack.c.l.b16 %v407
    %v478 = vunpack.c.l.b16 %v408
    %v479 = vunpack.c.l.b16 %v409
    %v480 = vunpack.c.l.b16 %v410
    %v481 = vunpack.c.l.b16 %v411
    %v482 = vunpack.c.l.b16 %v412
    %v483 = vunpack.c.l.b16 %v413
    %v484 = vunpack.c.l.b16 %v414
    %v485 = vunpack.c.l.b16 %v415
    %v486 = vunpack.c.l.b16 %v416
    %v487 = vunpack.c.l.b16 %v417
    %v488 = vunpack.c.l.b16 %v418
    %v489 = vunpack.c.l.b16 %v419
    %v490 = vunpack.c.l.b16 %v420
    %v491 = vunpack.c.l.b16 %v421
    %v492 = vunpack.c.l.b16 %v422
    %v493 = vunpack.c.l.b16 %v423
    %v494 = vunpack.c.l.b16 %v424
    %v495 = vunpack.c.l.b16 %v425
    %v496 = vunpack.c.l.b16 %v426
    %v497 = vunpack.c.l.b16 %v427
    %v498 = vunpack.c.l.b16 %v428
    %v499 = vunpack.c.l.b16 %v429
    %v500 = vunpack.c.l.b16 %v430
    %v501 = vunpack.c.l.b16 %v431
    %v502 = vunpack.c.l.b16 %v432
    %v503 = vunpack.c.l.b16 %v433
    %v504 = vpack.c.b16 %v473, %v472
    %v505 = vpack.c.b16 %v475, %v474
    %v506 = vpack.c.b16 %v477, %v476
    %v507 = vpack.c.b16 %v479, %v478
    %v508 = vpack.c.b16 %v481, %v480
    %v509 = vpack.c.b16 %v483, %v482
    %v510 = vpack.c.b16 %v485, %v484
    %v511 = vpack.c.b16 %v487, %v486
    %v512 = vpack.c.b16 %v489, %v488
    %v513 = vpack.c.b16 %v491, %v490
    %v514 = vpack.c.b16 %v493, %v492
    %v515 = vpack.c.b16 %v495, %v494
    %v516 = vpack.c.b16 %v497, %v496
    %v517 = vpack.c.b16 %v499, %v498
    %v518 = vpack.c.b16 %v501, %v500
    %v519 = vpack.c.b16 %v503, %v502
    %536 = vmatprep.subr.bf16.mxu0 0
    %537 = vmatpush1.bf16.msra.mxu0 %v511
    %538 = vmatprep.subr.bf16.mxu0 0
    %539 = vmatpush1.bf16.msra.mxu0 %v510
    %540 = vmatprep.subr.bf16.mxu0 0
    %541 = vmatpush1.bf16.msra.mxu0 %v509
    %542 = vmatprep.subr.bf16.mxu0 0
    %543 = vmatpush1.bf16.msra.mxu0 %v508
    %544 = vmatprep.subr.bf16.mxu0 0
    %545 = vmatpush1.bf16.msra.mxu0 %v507
    %546 = vmatprep.subr.bf16.mxu0 0
    %547 = vmatpush1.bf16.msra.mxu0 %v506
    %548 = vmatprep.subr.bf16.mxu0 0
    %549 = vmatpush1.bf16.msra.mxu0 %v505
    %550 = vmatprep.subr.bf16.mxu0 0
    %551 = vmatpush1.bf16.msra.mxu0 %v504
    %552 = vmatprep.subr.bf16.mxu0 0
    %553 = vmatpush2.bf16.msra.mxu0 %v519
    %554 = vmatprep.subr.bf16.mxu0 0
    %555 = vmatpush2.bf16.msra.mxu0 %v518
    %556 = vmatprep.subr.bf16.mxu0 0
    %557 = vmatpush2.bf16.msra.mxu0 %v517
    %558 = vmatprep.subr.bf16.mxu0 0
    %559 = vmatpush2.bf16.msra.mxu0 %v516
    %560 = vmatprep.subr.bf16.mxu0 0
    %561 = vmatpush2.bf16.msra.mxu0 %v515
    %562 = vmatprep.subr.bf16.mxu0 0
    %563 = vmatpush2.bf16.msra.mxu0 %v514
    %564 = vmatprep.subr.bf16.mxu0 0
    %565 = vmatpush2.bf16.msra.mxu0 %v513
    %566 = vmatprep.subr.bf16.mxu0 0
    %567 = vmatpush2.bf16.msra.mxu0 %v512
    %568 = vmatprep.mubr.bf16.mxu0 %v401
    %569 = vmatmul.mubr.bf16.gmra.mxu0 %v400
    %v570 = vpop.f32.mrf.mxu0
    %v571 = vadd.f32 %v438, %v570
    %v572 = vpop.f32.mrf.mxu0
    %v573 = vpop.f32.mrf.mxu0
    %v574 = vpop.f32.mrf.mxu0
    %575 = vdwg.mxu0
    %v577 = vlaneseq
    %v578 = vshrl.u32 %v577, 7
    %v579 = vsub.s32 0, %v578
    %v580 = vrot.slane %v79, %v579
    %v582 = vmax.f32 %v571, %v580
    %v584 = vlaneseq
    %v585 = vshrl.u32 %v584, 7
    %v586 = vsub.s32 0, %v585
    %v587 = vrot.slane %v80, %v586
    %v589 = vmin.f32 %v582, %v587
    %590 = vst [vmem:[#allocation10] sm:$0xff] %v589
    // Predicated region
    $region38: #{tpu_custom_call.1} parent=1 // pred_check
      _
    $region39: #{tpu_custom_call.1} parent=1 // pred_check_branch
      %592 = sbr.rel (0) target = $region41
    $region40: #{tpu_custom_call.1} parent=1 // pred_region
      %s594 = ssub.s32 128, 128
      %595 = vsyncadd [#allocation4], %s594
      %s597 = sshll.u32 [#allocation10], 4
      %s598 = int_to_ptr.vmem [resolvable:$true] %s597
      %600 = dma.vmem_to_hbm [thread:$0]  %s598, 128, %s5, [#allocation4]
    $region41: #{tpu_custom_call.1} parent=1 // pred_fallthru
      _
    // Predicated region
    $region42: #{tpu_custom_call.1} parent=1 // pred_check
      _
    $region43: #{tpu_custom_call.1} parent=1 // pred_check_branch
      %602 = sbr.rel (0) target = $region45
    $region44: #{tpu_custom_call.1} parent=1 // pred_region
      %603 = dma.done [#allocation4], 128
    $region45: #{tpu_custom_call.1} parent=1 // pred_fallthru
      _
    %604 = vsyncpa [#allocation3], 1
    %605 = vsyncpa [#allocation6], 1
    %606 = vsyncpa [#allocation9], 1
    %607 = vsyncpa [#allocation4], 1

</llo_original>
